<compile_context>
chip_gen: v5e
topology: v5e:2x2
jax: 0.10.0
libtpu: 0.0.40
codegen_flags: <defaults>
</compile_context>

<pallas_src>
import jax
import jax.numpy as jnp
from jax.experimental import pallas as pl
from jax.experimental.pallas import tpu as pltpu

LANES = 128  # vreg lane width


def _round_up(n, m):
    return ((n + m - 1) // m) * m


# -----------------------------------------------------------------------------
# Kernel: one batch tile per grid step, all four layers fused in VMEM (f32).
# -----------------------------------------------------------------------------
def dnn_kernel(x_ref, w1_ref, b1_ref, w2_ref, b2_ref, w3_ref, b3_ref,
               w4_ref, b4_ref, o_ref):
    x = x_ref[...]  # (tb, d_in) f32

    h = jnp.dot(x, w1_ref[...], preferred_element_type=jnp.float32) + b1_ref[...]
    h = jnp.maximum(h, 0.0)
    # dropout(p=0.2) -> identity in eval mode

    h = jnp.dot(h, w2_ref[...], preferred_element_type=jnp.float32) + b2_ref[...]
    h = jnp.maximum(h, 0.0)
    # dropout(p=0.4) -> identity in eval mode

    h = jnp.dot(h, w3_ref[...], preferred_element_type=jnp.float32) + b3_ref[...]
    h = jnp.maximum(h, 0.0)
    # dropout(p=0.2) -> identity in eval mode

    h = jnp.dot(h, w4_ref[...], preferred_element_type=jnp.float32) + b4_ref[...]
    o_ref[...] = h.astype(o_ref.dtype)  # narrow (tb, out_dim) store


# -----------------------------------------------------------------------------
# Parameter packing: zero-pad hidden widths (32/64/32) to 128 lanes so the
# intermediate activations are lane-dense.  The final layer keeps its true
# output width (narrow store).  Zero padding keeps the math exactly equal.
# -----------------------------------------------------------------------------
def pack_params(params):
    (w1, b1, w2, b2, w3, b3, w4, b4) = params

    def pad_w(w, k_to, n_to):
        k, n = w.shape
        return jnp.pad(w, ((0, k_to - k), (0, n_to - n))).astype(jnp.float32)

    def pad_b(b, n_to):
        b = b.reshape(1, -1)
        return jnp.pad(b, ((0, 0), (0, n_to - b.shape[1]))).astype(jnp.float32)

    d_in = w1.shape[0]
    out_dim = w4.shape[1]
    h1p = _round_up(w1.shape[1], LANES)  # 32 -> 128
    h2p = _round_up(w2.shape[1], LANES)  # 64 -> 128
    h3p = _round_up(w3.shape[1], LANES)  # 32 -> 128

    packed = (
        pad_w(w1, d_in, h1p), pad_b(b1, h1p),
        pad_w(w2, h1p, h2p), pad_b(b2, h2p),
        pad_w(w3, h2p, h3p), pad_b(b3, h3p),
        pad_w(w4, h3p, out_dim), pad_b(b4, out_dim),  # output stays narrow
    )
    return packed, out_dim


# -----------------------------------------------------------------------------
# Wrapper: batch-tiled pallas_call with VMEM-resident weights.
# -----------------------------------------------------------------------------
def dnn_forward(x, packed_params, out_dim, *, block_batch=4096):
    (w1, b1, w2, b2, w3, b3, w4, b4) = packed_params
    batch, d_in = x.shape
    x = x.astype(jnp.float32)  # no-op for f32 inputs; no bf16 pass over x

    # Batch tile: multiple of 8 sublanes, capped at block_batch, and capped so
    # there are >= 2 tiles whenever the batch is non-trivial (v7x: 2 TCs).
    batch8 = _round_up(batch, 8)
    tb = min(block_batch, batch8)
    if batch8 >= 16:
        tb = min(tb, _round_up(pl.cdiv(batch8, 2), 8))
    tb = _round_up(tb, 8)

    padded_batch = _round_up(batch, tb)
    if padded_batch != batch:  # only pay the pad copy for ragged batches
        x = jnp.pad(x, ((0, padded_batch - batch), (0, 0)))

    grid = (padded_batch // tb,)

    def resident(shape):
        # Constant index_map -> DMA'd once, stays in VMEM across all tiles.
        return pl.BlockSpec(shape, lambda i: (0,) * len(shape))

    h1p, h2p, h3p = w1.shape[1], w2.shape[1], w3.shape[1]
    flops = 2 * padded_batch * (d_in * h1p + h1p * h2p + h2p * h3p + h3p * out_dim)
    bytes_accessed = int(
        x.size * x.dtype.itemsize
        + sum(int(p.size) * p.dtype.itemsize for p in packed_params)
        + padded_batch * out_dim * 4
    )

    out = pl.pallas_call(
        dnn_kernel,
        out_shape=jax.ShapeDtypeStruct((padded_batch, out_dim), jnp.float32),
        grid=grid,
        in_specs=[
            pl.BlockSpec((tb, d_in), lambda i: (i, 0)),
            resident(w1.shape), resident(b1.shape),
            resident(w2.shape), resident(b2.shape),
            resident(w3.shape), resident(b3.shape),
            resident(w4.shape), resident(b4.shape),
        ],
        out_specs=pl.BlockSpec((tb, out_dim), lambda i: (i, 0)),
        compiler_params=pltpu.CompilerParams(
            dimension_semantics=("parallel",),
            vmem_limit_bytes=32 * 1024 * 1024,
        ),
        cost_estimate=pl.CostEstimate(
            flops=flops, transcendentals=0, bytes_accessed=bytes_accessed),
    )(x, w1, b1, w2, b2, w3, b3, w4, b4)

    if padded_batch != batch:
        out = out[:batch]
    return out


# -----------------------------------------------------------------------------
# Init (mirrors the torch module: weights ~ N(0, 0.1), default Linear bias init)
# -----------------------------------------------------------------------------
def init_params(key, input_dim, output_dim):
    dims = [(input_dim, 32), (32, 64), (64, 32), (32, output_dim)]
    params = []
    for (fan_in, fan_out) in dims:
        key, kw, kb = jax.random.split(key, 3)
        w = 0.1 * jax.random.normal(kw, (fan_in, fan_out), dtype=jnp.float32)
        bound = 1.0 / jnp.sqrt(jnp.float32(fan_in))
        b = jax.random.uniform(kb, (1, fan_out), dtype=jnp.float32,
                               minval=-bound, maxval=bound)
        params += [w, b]
    return tuple(params)


def dnn_reference(x, params):
    """Pure-JAX f32 reference (eval mode: dropout = identity)."""
    (w1, b1, w2, b2, w3, b3, w4, b4) = params
    h = jnp.maximum(jnp.dot(x, w1) + b1, 0.0)
    h = jnp.maximum(jnp.dot(h, w2) + b2, 0.0)
    h = jnp.maximum(jnp.dot(h, w3) + b3, 0.0)
    return jnp.dot(h, w4) + b4


if __name__ == "__main__":
    key = jax.random.PRNGKey(0)
    input_dim, output_dim = 16, 4
    params = init_params(key, input_dim, output_dim)
    packed, out_dim = pack_params(params)

    # Case 1: batch divides cleanly -> grid=(2,) (>= 2 tiles for v7x), no pad copy.
    key, kx = jax.random.split(key)
    x1 = jax.random.normal(kx, (64, input_dim), dtype=jnp.float32)
    out1 = jax.block_until_ready(dnn_forward(x1, packed, out_dim))
    ref1 = dnn_reference(x1, params)
    assert out1.shape == (64, output_dim)
    assert jnp.allclose(out1, ref1, atol=5e-3, rtol=1e-2), "mismatch (case 1)"

    # Case 2: ragged batch -> exercises batch padding + row slicing.
    key, kx = jax.random.split(key)
    x2 = jax.random.normal(kx, (19, input_dim), dtype=jnp.float32)
    out2 = jax.block_until_ready(dnn_forward(x2, packed, out_dim))
    ref2 = dnn_reference(x2, params)
    assert out2.shape == (19, output_dim)
    assert jnp.allclose(out2, ref2, atol=5e-3, rtol=1e-2), "mismatch (case 2)"

    # Case 3: explicit small tile -> multi-step pipelined grid (grid=(4,)).
    out3 = jax.block_until_ready(dnn_forward(x1, packed, out_dim, block_batch=16))
    assert jnp.allclose(out3, ref1, atol=5e-3, rtol=1e-2), "mismatch (case 3)"

    print("KERNEL_OK")
</pallas_src>

<mosaic_0001>
module attributes {stable_mosaic.version = 11 : i64} {
  func.func @dnn_kernel(%arg0: i32, %arg1: memref<32x16xf32, #tpu.memory_space<vmem>>, %arg2: memref<16x128xf32, #tpu.memory_space<vmem>>, %arg3: memref<1x128xf32, #tpu.memory_space<vmem>>, %arg4: memref<128x128xf32, #tpu.memory_space<vmem>>, %arg5: memref<1x128xf32, #tpu.memory_space<vmem>>, %arg6: memref<128x128xf32, #tpu.memory_space<vmem>>, %arg7: memref<1x128xf32, #tpu.memory_space<vmem>>, %arg8: memref<128x4xf32, #tpu.memory_space<vmem>>, %arg9: memref<1x4xf32, #tpu.memory_space<vmem>>, %arg10: memref<32x4xf32, #tpu.memory_space<vmem>>) attributes {dimension_semantics = [#tpu.dimension_semantics<parallel>], iteration_bounds = array<i64: 2>, scalar_prefetch = 0 : i64, scratch_operands = 0 : i64, tpu.core_type = #tpu.core_type<tc>, window_params = [{transform_indices = @transform_0, window_bounds = array<i64: 32, 16>}, {pipeline_mode = #tpu.pipeline_mode<synchronous>, transform_indices = @transform_1, window_bounds = array<i64: 16, 128>}, {pipeline_mode = #tpu.pipeline_mode<synchronous>, transform_indices = @transform_2, window_bounds = array<i64: 1, 128>}, {pipeline_mode = #tpu.pipeline_mode<synchronous>, transform_indices = @transform_3, window_bounds = array<i64: 128, 128>}, {pipeline_mode = #tpu.pipeline_mode<synchronous>, transform_indices = @transform_4, window_bounds = array<i64: 1, 128>}, {pipeline_mode = #tpu.pipeline_mode<synchronous>, transform_indices = @transform_5, window_bounds = array<i64: 128, 128>}, {pipeline_mode = #tpu.pipeline_mode<synchronous>, transform_indices = @transform_6, window_bounds = array<i64: 1, 128>}, {pipeline_mode = #tpu.pipeline_mode<synchronous>, transform_indices = @transform_7, window_bounds = array<i64: 128, 4>}, {pipeline_mode = #tpu.pipeline_mode<synchronous>, transform_indices = @transform_8, window_bounds = array<i64: 1, 4>}, {transform_indices = @transform_9, window_bounds = array<i64: 32, 4>}]} {
    %c0 = arith.constant 0 : index
    %c0_0 = arith.constant 0 : index
    %0 = vector.load %arg1[%c0, %c0_0] : memref<32x16xf32, #tpu.memory_space<vmem>>, vector<32x16xf32>
    %c0_1 = arith.constant 0 : index
    %c0_2 = arith.constant 0 : index
    %1 = vector.load %arg2[%c0_1, %c0_2] : memref<16x128xf32, #tpu.memory_space<vmem>>, vector<16x128xf32>
    %cst = arith.constant dense<0.000000e+00> : vector<32x128xf32>
    %2 = tpu.matmul %0, %1, %cst {dimension_numbers = #tpu.dot_dimension_numbers<[1], [0], [0], [1], [0, 0, 1, 1], [], []>} : vector<32x16xf32>, vector<16x128xf32>, vector<32x128xf32> -> vector<32x128xf32>
    %c0_3 = arith.constant 0 : index
    %c0_4 = arith.constant 0 : index
    %3 = vector.load %arg3[%c0_3, %c0_4] : memref<1x128xf32, #tpu.memory_space<vmem>>, vector<1x128xf32>
    %4 = vector.broadcast %3 : vector<1x128xf32> to vector<32x128xf32>
    %5 = arith.addf %2, %4 : vector<32x128xf32>
    %cst_5 = arith.constant 0.000000e+00 : f32
    %6 = vector.broadcast %cst_5 : f32 to vector<32x128xf32>
    %7 = arith.maximumf %5, %6 : vector<32x128xf32>
    %c0_6 = arith.constant 0 : index
    %c0_7 = arith.constant 0 : index
    %8 = vector.load %arg4[%c0_6, %c0_7] : memref<128x128xf32, #tpu.memory_space<vmem>>, vector<128x128xf32>
    %cst_8 = arith.constant dense<0.000000e+00> : vector<32x128xf32>
    %9 = tpu.matmul %7, %8, %cst_8 {dimension_numbers = #tpu.dot_dimension_numbers<[1], [0], [0], [1], [0, 0, 1, 1], [], []>} : vector<32x128xf32>, vector<128x128xf32>, vector<32x128xf32> -> vector<32x128xf32>
    %c0_9 = arith.constant 0 : index
    %c0_10 = arith.constant 0 : index
    %10 = vector.load %arg5[%c0_9, %c0_10] : memref<1x128xf32, #tpu.memory_space<vmem>>, vector<1x128xf32>
    %11 = vector.broadcast %10 : vector<1x128xf32> to vector<32x128xf32>
    %12 = arith.addf %9, %11 : vector<32x128xf32>
    %cst_11 = arith.constant 0.000000e+00 : f32
    %13 = vector.broadcast %cst_11 : f32 to vector<32x128xf32>
    %14 = arith.maximumf %12, %13 : vector<32x128xf32>
    %c0_12 = arith.constant 0 : index
    %c0_13 = arith.constant 0 : index
    %15 = vector.load %arg6[%c0_12, %c0_13] : memref<128x128xf32, #tpu.memory_space<vmem>>, vector<128x128xf32>
    %cst_14 = arith.constant dense<0.000000e+00> : vector<32x128xf32>
    %16 = tpu.matmul %14, %15, %cst_14 {dimension_numbers = #tpu.dot_dimension_numbers<[1], [0], [0], [1], [0, 0, 1, 1], [], []>} : vector<32x128xf32>, vector<128x128xf32>, vector<32x128xf32> -> vector<32x128xf32>
    %c0_15 = arith.constant 0 : index
    %c0_16 = arith.constant 0 : index
    %17 = vector.load %arg7[%c0_15, %c0_16] : memref<1x128xf32, #tpu.memory_space<vmem>>, vector<1x128xf32>
    %18 = vector.broadcast %17 : vector<1x128xf32> to vector<32x128xf32>
    %19 = arith.addf %16, %18 : vector<32x128xf32>
    %cst_17 = arith.constant 0.000000e+00 : f32
    %20 = vector.broadcast %cst_17 : f32 to vector<32x128xf32>
    %21 = arith.maximumf %19, %20 : vector<32x128xf32>
    %c0_18 = arith.constant 0 : index
    %c0_19 = arith.constant 0 : index
    %22 = vector.load %arg8[%c0_18, %c0_19] : memref<128x4xf32, #tpu.memory_space<vmem>>, vector<128x4xf32>
    %cst_20 = arith.constant dense<0.000000e+00> : vector<32x4xf32>
    %23 = tpu.matmul %21, %22, %cst_20 {dimension_numbers = #tpu.dot_dimension_numbers<[1], [0], [0], [1], [0, 0, 1, 1], [], []>} : vector<32x128xf32>, vector<128x4xf32>, vector<32x4xf32> -> vector<32x4xf32>
    %c0_21 = arith.constant 0 : index
    %c0_22 = arith.constant 0 : index
    %24 = vector.load %arg9[%c0_21, %c0_22] : memref<1x4xf32, #tpu.memory_space<vmem>>, vector<1x4xf32>
    %25 = vector.broadcast %24 : vector<1x4xf32> to vector<32x4xf32>
    %26 = arith.addf %23, %25 : vector<32x4xf32>
    %c0_23 = arith.constant 0 : index
    %c0_24 = arith.constant 0 : index
    %27 = vector.load %arg10[%c0_23, %c0_24] : memref<32x4xf32, #tpu.memory_space<vmem>>, vector<32x4xf32>
    tpu.vector_store %arg10[%c0_23, %c0_24], %26 {strides = array<i32>} : memref<32x4xf32, #tpu.memory_space<vmem>>, vector<32x4xf32>,
    return
  }
  func.func @transform_0(%arg0: i32) -> (i32, i32) {
    %c0_i32 = arith.constant 0 : i32
    %c0_i32_0 = arith.constant 0 : i32
    return %arg0, %c0_i32 : i32, i32
  }
  func.func @transform_1(%arg0: i32) -> (i32, i32) {
    %c0_i32 = arith.constant 0 : i32
    %c0_i32_0 = arith.constant 0 : i32
    %c0_i32_1 = arith.constant 0 : i32
    return %c0_i32, %c0_i32_0 : i32, i32
  }
  func.func @transform_2(%arg0: i32) -> (i32, i32) {
    %c0_i32 = arith.constant 0 : i32
    %c0_i32_0 = arith.constant 0 : i32
    %c0_i32_1 = arith.constant 0 : i32
    return %c0_i32, %c0_i32_0 : i32, i32
  }
  func.func @transform_3(%arg0: i32) -> (i32, i32) {
    %c0_i32 = arith.constant 0 : i32
    %c0_i32_0 = arith.constant 0 : i32
    %c0_i32_1 = arith.constant 0 : i32
    return %c0_i32, %c0_i32_0 : i32, i32
  }
  func.func @transform_4(%arg0: i32) -> (i32, i32) {
    %c0_i32 = arith.constant 0 : i32
    %c0_i32_0 = arith.constant 0 : i32
    %c0_i32_1 = arith.constant 0 : i32
    return %c0_i32, %c0_i32_0 : i32, i32
  }
  func.func @transform_5(%arg0: i32) -> (i32, i32) {
    %c0_i32 = arith.constant 0 : i32
    %c0_i32_0 = arith.constant 0 : i32
    %c0_i32_1 = arith.constant 0 : i32
    return %c0_i32, %c0_i32_0 : i32, i32
  }
  func.func @transform_6(%arg0: i32) -> (i32, i32) {
    %c0_i32 = arith.constant 0 : i32
    %c0_i32_0 = arith.constant 0 : i32
    %c0_i32_1 = arith.constant 0 : i32
    return %c0_i32, %c0_i32_0 : i32, i32
  }
  func.func @transform_7(%arg0: i32) -> (i32, i32) {
    %c0_i32 = arith.constant 0 : i32
    %c0_i32_0 = arith.constant 0 : i32
    %c0_i32_1 = arith.constant 0 : i32
    return %c0_i32, %c0_i32_0 : i32, i32
  }
  func.func @transform_8(%arg0: i32) -> (i32, i32) {
    %c0_i32 = arith.constant 0 : i32
    %c0_i32_0 = arith.constant 0 : i32
    %c0_i32_1 = arith.constant 0 : i32
    return %c0_i32, %c0_i32_0 : i32, i32
  }
  func.func @transform_9(%arg0: i32) -> (i32, i32) {
    %c0_i32 = arith.constant 0 : i32
    %c0_i32_0 = arith.constant 0 : i32
    return %arg0, %c0_i32 : i32, i32
  }
}

</mosaic_0001>

<llo_original>
// kernel: tpu_custom_call.1
$region0: #{tpu_custom_call.1}
  #allocation0 [shape = 'u32[]', space=smem, size = 0x4, offset = 0x4, fixed_abs, tag = 'smem constant byte address 0x4 - core index']
  #allocation1 [shape = 'u32[72,128]{1,0:T(1,128)}', space=vmem, size = 0x9000, scoped, tag = 'internal scratch']
  %s0 = inlined_call_operand.vmem [shape: f32[64,16], index: 0, kind: input, shape index: {}]
  %s1 = inlined_call_operand.vmem [shape: f32[16,128], index: 1, kind: input, shape index: {}]
  %s2 = inlined_call_operand.vmem [shape: f32[1,128], index: 2, kind: input, shape index: {}]
  %s3 = inlined_call_operand.vmem [shape: f32[128,128], index: 3, kind: input, shape index: {}]
  %s4 = inlined_call_operand.vmem [shape: f32[1,128], index: 4, kind: input, shape index: {}]
  %s5 = inlined_call_operand.hbm [shape: f32[128,128], index: 5, kind: input, shape index: {}]
  %s6 = inlined_call_operand.vmem [shape: f32[1,128], index: 6, kind: input, shape index: {}]
  %s7 = inlined_call_operand.vmem [shape: f32[128,4], index: 7, kind: input, shape index: {}]
  %s8 = inlined_call_operand.vmem [shape: f32[1,4], index: 8, kind: input, shape index: {}]
  %s9 = inlined_call_operand.vmem [shape: f32[64,4], index: 9, kind: output, shape index: {}]
  %s10 = sld [smem:[#allocation0]]
  $region73: #{tpu_custom_call.1} parent=0
    _
  %s12 = ssub.s32 1, %s10
  %s13 = scalar_select 0, %s12, %s10
  $region1: #{tpu_custom_call.1} parent=0
    #allocation2 [shape = 'u8[65536]{0}', space=vmem, size = 0x10000, scoped, tag = 'input window, operand 5, single buffered']
    #allocation3 [shape = 's32[2]{0}', space=sflag, size = 0x8, scoped, tag = 'scoped memory for tpu_custom_call.1']
    %14 = vsyncpa [#allocation3], 0
    loop: start=0, step=1, limit=4
    $region2: #{tpu_custom_call.1} parent=1 // loop_pre_header
      _
    $region3: #{tpu_custom_call.1} parent=1 // loop_header
      %s16 = sphi 0, %s20
      %p17 = scmp.ge.s32.totalorder %s16, 4
      %s26 = sphi 0, %s28
      %s29 = sphi 0, %s26
      %s30 = sphi 0, %s29
      %s46 = sphi 0, %s30
      %s50 = sphi 0, %s50
      %s52 = sphi 0, %s50
      %s53 = sphi 0, %s52
      %s67 = sphi 0, %s53
      %s71 = sphi 0, %s71
      %s73 = sphi 0, %s71
      %s74 = sphi 0, %s73
      %s88 = sphi 0, %s74
      %s92 = sphi 0, %s92
      %s94 = sphi 0, %s92
      %s95 = sphi 0, %s94
      %s109 = sphi 0, %s95
      %s113 = sphi 0, %s113
      %s115 = sphi 0, %s113
      %s116 = sphi 0, %s115
      %s130 = sphi 0, %s116
      %s134 = sphi 0, %s134
      %s136 = sphi 0, %s134
      %s137 = sphi 0, %s136
      %s151 = sphi 0, %s137
      %s155 = sphi 0, %s155
      %s157 = sphi 0, %s155
      %s158 = sphi 0, %s157
      %s172 = sphi 0, %s158
      %s176 = sphi 0, %s176
      %s178 = sphi 0, %s176
      %s179 = sphi 0, %s178
      %s193 = sphi 0, %s179
      %s197 = sphi 0, %s197
      %s199 = sphi 0, %s197
      %s200 = sphi 0, %s199
      %s214 = sphi 0, %s200
      %s220 = sphi 0, %s222
      %s223 = sphi 0, %s220
      %s224 = sphi 0, %s223
      %s240 = sphi 0, %s224
    $region4: #{tpu_custom_call.1} parent=1 // loop_header_branch
      %19 = sbr.rel (%p17) target = $region8
    $region5: #{tpu_custom_call.1} parent=1 // loop_body
      %s21 = ssub.s32 %s16, 1
      %s22 = ssub.s32 %s16, 2
      %s23 = sadd.s32 %s16, 1
      %s24 = ssub.s32 %s16, %s23
      %p25 = scmp.eq.s32.totalorder %s24, 0
      %s27 = sadd.s32 %s26, 1
      %s28 = scalar_select %p25, %s26, %s27
      %p31 = pneg %p25
      %p32 = scmp.eq.s32.totalorder %s16, 1
      %p33 = por %p31, %p32
      %p34 = scmp.ne.s32.totalorder %s26, %s29
      %p35 = scmp.eq.s32.totalorder %s16, 0
      %p36 = por %p34, %p35
      %p37 = scmp.ne.s32.totalorder %s26, %s29
      %p38 = scmp.eq.s32.totalorder %s21, 1
      %p39 = por %p37, %p38
      %p40 = scmp.ne.s32.totalorder %s29, %s30
      %p41 = scmp.eq.s32.totalorder %s21, 0
      %p42 = por %p40, %p41
      %p43 = scmp.ne.s32.totalorder %s29, %s30
      %p44 = scmp.eq.s32.totalorder %s22, 1
      %p45 = por %p43, %p44
      %p47 = scmp.ne.s32.totalorder %s30, %s46
      %p48 = scmp.eq.s32.totalorder %s22, 0
      %p49 = por %p47, %p48
      %s51 = sadd.s32 %s50, 1
      %p54 = scmp.eq.s32.totalorder %s16, 1
      %p55 = scmp.ne.s32.totalorder %s50, %s52
      %p56 = scmp.eq.s32.totalorder %s16, 0
      %p57 = por %p55, %p56
      %p58 = scmp.ne.s32.totalorder %s50, %s52
      %p59 = scmp.eq.s32.totalorder %s21, 1
      %p60 = por %p58, %p59
      %p61 = scmp.ne.s32.totalorder %s52, %s53
      %p62 = scmp.eq.s32.totalorder %s21, 0
      %p63 = por %p61, %p62
      %p64 = scmp.ne.s32.totalorder %s52, %s53
      %p65 = scmp.eq.s32.totalorder %s22, 1
      %p66 = por %p64, %p65
      %p68 = scmp.ne.s32.totalorder %s53, %s67
      %p69 = scmp.eq.s32.totalorder %s22, 0
      %p70 = por %p68, %p69
      %s72 = sadd.s32 %s71, 1
      %p75 = scmp.eq.s32.totalorder %s16, 1
      %p76 = scmp.ne.s32.totalorder %s71, %s73
      %p77 = scmp.eq.s32.totalorder %s16, 0
      %p78 = por %p76, %p77
      %p79 = scmp.ne.s32.totalorder %s71, %s73
      %p80 = scmp.eq.s32.totalorder %s21, 1
      %p81 = por %p79, %p80
      %p82 = scmp.ne.s32.totalorder %s73, %s74
      %p83 = scmp.eq.s32.totalorder %s21, 0
      %p84 = por %p82, %p83
      %p85 = scmp.ne.s32.totalorder %s73, %s74
      %p86 = scmp.eq.s32.totalorder %s22, 1
      %p87 = por %p85, %p86
      %p89 = scmp.ne.s32.totalorder %s74, %s88
      %p90 = scmp.eq.s32.totalorder %s22, 0
      %p91 = por %p89, %p90
      %s93 = sadd.s32 %s92, 1
      %p96 = scmp.eq.s32.totalorder %s16, 1
      %p97 = scmp.ne.s32.totalorder %s92, %s94
      %p98 = scmp.eq.s32.totalorder %s16, 0
      %p99 = por %p97, %p98
      %p100 = scmp.ne.s32.totalorder %s92, %s94
      %p101 = scmp.eq.s32.totalorder %s21, 1
      %p102 = por %p100, %p101
      %p103 = scmp.ne.s32.totalorder %s94, %s95
      %p104 = scmp.eq.s32.totalorder %s21, 0
      %p105 = por %p103, %p104
      %p106 = scmp.ne.s32.totalorder %s94, %s95
      %p107 = scmp.eq.s32.totalorder %s22, 1
      %p108 = por %p106, %p107
      %p110 = scmp.ne.s32.totalorder %s95, %s109
      %p111 = scmp.eq.s32.totalorder %s22, 0
      %p112 = por %p110, %p111
      %s114 = sadd.s32 %s113, 1
      %p117 = scmp.eq.s32.totalorder %s16, 1
      %p118 = scmp.ne.s32.totalorder %s113, %s115
      %p119 = scmp.eq.s32.totalorder %s16, 0
      %p120 = por %p118, %p119
      %p121 = scmp.ne.s32.totalorder %s113, %s115
      %p122 = scmp.eq.s32.totalorder %s21, 1
      %p123 = por %p121, %p122
      %p124 = scmp.ne.s32.totalorder %s115, %s116
      %p125 = scmp.eq.s32.totalorder %s21, 0
      %p126 = por %p124, %p125
      %p127 = scmp.ne.s32.totalorder %s115, %s116
      %p128 = scmp.eq.s32.totalorder %s22, 1
      %p129 = por %p127, %p128
      %p131 = scmp.ne.s32.totalorder %s116, %s130
      %p132 = scmp.eq.s32.totalorder %s22, 0
      %p133 = por %p131, %p132
      %s135 = sadd.s32 %s134, 1
      %p138 = scmp.eq.s32.totalorder %s16, 1
      %p139 = scmp.ne.s32.totalorder %s134, %s136
      %p140 = scmp.eq.s32.totalorder %s16, 0
      %p141 = por %p139, %p140
      %p142 = scmp.ne.s32.totalorder %s134, %s136
      %p143 = scmp.eq.s32.totalorder %s21, 1
      %p144 = por %p142, %p143
      %p145 = scmp.ne.s32.totalorder %s136, %s137
      %p146 = scmp.eq.s32.totalorder %s21, 0
      %p147 = por %p145, %p146
      %p148 = scmp.ne.s32.totalorder %s136, %s137
      %p149 = scmp.eq.s32.totalorder %s22, 1
      %p150 = por %p148, %p149
      %p152 = scmp.ne.s32.totalorder %s137, %s151
      %p153 = scmp.eq.s32.totalorder %s22, 0
      %p154 = por %p152, %p153
      %s156 = sadd.s32 %s155, 1
      %p159 = scmp.eq.s32.totalorder %s16, 1
      %p160 = scmp.ne.s32.totalorder %s155, %s157
      %p161 = scmp.eq.s32.totalorder %s16, 0
      %p162 = por %p160, %p161
      %p163 = scmp.ne.s32.totalorder %s155, %s157
      %p164 = scmp.eq.s32.totalorder %s21, 1
      %p165 = por %p163, %p164
      %p166 = scmp.ne.s32.totalorder %s157, %s158
      %p167 = scmp.eq.s32.totalorder %s21, 0
      %p168 = por %p166, %p167
      %p169 = scmp.ne.s32.totalorder %s157, %s158
      %p170 = scmp.eq.s32.totalorder %s22, 1
      %p171 = por %p169, %p170
      %p173 = scmp.ne.s32.totalorder %s158, %s172
      %p174 = scmp.eq.s32.totalorder %s22, 0
      %p175 = por %p173, %p174
      %s177 = sadd.s32 %s176, 1
      %p180 = scmp.eq.s32.totalorder %s16, 1
      %p181 = scmp.ne.s32.totalorder %s176, %s178
      %p182 = scmp.eq.s32.totalorder %s16, 0
      %p183 = por %p181, %p182
      %p184 = scmp.ne.s32.totalorder %s176, %s178
      %p185 = scmp.eq.s32.totalorder %s21, 1
      %p186 = por %p184, %p185
      %p187 = scmp.ne.s32.totalorder %s178, %s179
      %p188 = scmp.eq.s32.totalorder %s21, 0
      %p189 = por %p187, %p188
      %p190 = scmp.ne.s32.totalorder %s178, %s179
      %p191 = scmp.eq.s32.totalorder %s22, 1
      %p192 = por %p190, %p191
      %p194 = scmp.ne.s32.totalorder %s179, %s193
      %p195 = scmp.eq.s32.totalorder %s22, 0
      %p196 = por %p194, %p195
      %s198 = sadd.s32 %s197, 1
      %p201 = scmp.eq.s32.totalorder %s16, 1
      %p202 = scmp.ne.s32.totalorder %s197, %s199
      %p203 = scmp.eq.s32.totalorder %s16, 0
      %p204 = por %p202, %p203
      %p205 = scmp.ne.s32.totalorder %s197, %s199
      %p206 = scmp.eq.s32.totalorder %s21, 1
      %p207 = por %p205, %p206
      %p208 = scmp.ne.s32.totalorder %s199, %s200
      %p209 = scmp.eq.s32.totalorder %s21, 0
      %p210 = por %p208, %p209
      %p211 = scmp.ne.s32.totalorder %s199, %s200
      %p212 = scmp.eq.s32.totalorder %s22, 1
      %p213 = por %p211, %p212
      %p215 = scmp.ne.s32.totalorder %s200, %s214
      %p216 = scmp.eq.s32.totalorder %s22, 0
      %p217 = por %p215, %p216
      %s218 = ssub.s32 %s16, %s23
      %p219 = scmp.eq.s32.totalorder %s218, 0
      %s221 = sadd.s32 %s220, 1
      %s222 = scalar_select %p219, %s220, %s221
      %p225 = pneg %p219
      %p226 = scmp.eq.s32.totalorder %s16, 1
      %p227 = por %p225, %p226
      %p228 = scmp.ne.s32.totalorder %s220, %s223
      %p229 = scmp.eq.s32.totalorder %s16, 0
      %p230 = por %p228, %p229
      %p231 = scmp.ne.s32.totalorder %s220, %s223
      %p232 = scmp.eq.s32.totalorder %s21, 1
      %p233 = por %p231, %p232
      %p234 = scmp.ne.s32.totalorder %s223, %s224
      %p235 = scmp.eq.s32.totalorder %s21, 0
      %p236 = por %p234, %p235
      %p237 = scmp.ne.s32.totalorder %s223, %s224
      %p238 = scmp.eq.s32.totalorder %s22, 1
      %p239 = por %p237, %p238
      %p241 = scmp.ne.s32.totalorder %s224, %s240
      %p242 = scmp.eq.s32.totalorder %s22, 0
      %p243 = por %p241, %p242
      %p244 = scmp.le.s32.totalorder 1, %s16
      %p245 = scmp.lt.s32.totalorder %s16, 3
      %p246 = pnand %p244, %p245
      %p247 = pneg %p246
      // Predicated region
      $region9: #{tpu_custom_call.1} parent=5 // pred_check
        _
      $region10: #{tpu_custom_call.1} parent=5 // pred_check_branch
        %249 = sbr.rel (%p246) target = $region12
      $region11: #{tpu_custom_call.1} parent=5 // pred_region
        %s250 = ssub.s32 %s16, 1
        // Predicated region
        $region13: #{tpu_custom_call.1} parent=11 // pred_check
          %p251 = pneg %p63
        $region14: #{tpu_custom_call.1} parent=11 // pred_check_branch
          %253 = sbr.rel (%p251) target = $region16
        $region15: #{tpu_custom_call.1} parent=11 // pred_region
          _
        $region16: #{tpu_custom_call.1} parent=11 // pred_fallthru
          _
        // Predicated region
        $region17: #{tpu_custom_call.1} parent=11 // pred_check
          %p254 = pneg %p84
        $region18: #{tpu_custom_call.1} parent=11 // pred_check_branch
          %256 = sbr.rel (%p254) target = $region20
        $region19: #{tpu_custom_call.1} parent=11 // pred_region
          _
        $region20: #{tpu_custom_call.1} parent=11 // pred_fallthru
          _
        // Predicated region
        $region21: #{tpu_custom_call.1} parent=11 // pred_check
          %p257 = pneg %p105
        $region22: #{tpu_custom_call.1} parent=11 // pred_check_branch
          %259 = sbr.rel (%p257) target = $region24
        $region23: #{tpu_custom_call.1} parent=11 // pred_region
          _
        $region24: #{tpu_custom_call.1} parent=11 // pred_fallthru
          _
        // Predicated region
        $region25: #{tpu_custom_call.1} parent=11 // pred_check
          %p260 = pneg %p126
        $region26: #{tpu_custom_call.1} parent=11 // pred_check_branch
          %262 = sbr.rel (%p260) target = $region28
        $region27: #{tpu_custom_call.1} parent=11 // pred_region
          _
        $region28: #{tpu_custom_call.1} parent=11 // pred_fallthru
          _
        // Predicated region
        $region29: #{tpu_custom_call.1} parent=11 // pred_check
          %p263 = pneg %p147
        $region30: #{tpu_custom_call.1} parent=11 // pred_check_branch
          %265 = sbr.rel (%p263) target = $region32
        $region31: #{tpu_custom_call.1} parent=11 // pred_region
          %267 = vsyncadd [#allocation3], 0
          %s268 = sshll.u32 %s5, 4
          %s269 = int_to_ptr.hbm [resolvable:$true] %s268
          %s270 = sshll.u32 [#allocation2], 4
          %s271 = int_to_ptr.vmem [resolvable:$true] %s270
          %276 = dma.hbm_to_vmem [thread:$0]  %s269, 2048, %s271, [#allocation3], 128, 128, 8
        $region32: #{tpu_custom_call.1} parent=11 // pred_fallthru
          _
        // Predicated region
        $region33: #{tpu_custom_call.1} parent=11 // pred_check
          %p277 = pneg %p168
        $region34: #{tpu_custom_call.1} parent=11 // pred_check_branch
          %279 = sbr.rel (%p277) target = $region36
        $region35: #{tpu_custom_call.1} parent=11 // pred_region
          _
        $region36: #{tpu_custom_call.1} parent=11 // pred_fallthru
          _
        // Predicated region
        $region37: #{tpu_custom_call.1} parent=11 // pred_check
          %p280 = pneg %p189
        $region38: #{tpu_custom_call.1} parent=11 // pred_check_branch
          %282 = sbr.rel (%p280) target = $region40
        $region39: #{tpu_custom_call.1} parent=11 // pred_region
          _
        $region40: #{tpu_custom_call.1} parent=11 // pred_fallthru
          _
        // Predicated region
        $region41: #{tpu_custom_call.1} parent=11 // pred_check
          %p283 = pneg %p210
        $region42: #{tpu_custom_call.1} parent=11 // pred_check_branch
          %285 = sbr.rel (%p283) target = $region44
        $region43: #{tpu_custom_call.1} parent=11 // pred_region
          _
        $region44: #{tpu_custom_call.1} parent=11 // pred_fallthru
          _
      $region12: #{tpu_custom_call.1} parent=5 // pred_fallthru
        _
      %p286 = scmp.lt.s32.totalorder %s16, 2
      // Predicated region
      $region45: #{tpu_custom_call.1} parent=5 // pred_check
        %p287 = pneg %p286
      $region46: #{tpu_custom_call.1} parent=5 // pred_check_branch
        %289 = sbr.rel (%p287) target = $region48
      $region47: #{tpu_custom_call.1} parent=5 // pred_region
        // Predicated region
        $region49: #{tpu_custom_call.1} parent=47 // pred_check
          %p290 = pneg %p36
        $region50: #{tpu_custom_call.1} parent=47 // pred_check_branch
          %292 = sbr.rel (%p290) target = $region52
        $region51: #{tpu_custom_call.1} parent=47 // pred_region
          %s293 = smul.u32 4, %s16
          %p294 = scmp.lt.s32.totalorder %s293, 7
          %s295 = scalar_select %p294, %s293, 7
          %s296 = smul.addr %s295, 8
          %s297 = scalar_lea.vmem %s0, %s296
          %s298 = smul.u32 4, %s16
        $region52: #{tpu_custom_call.1} parent=47 // pred_fallthru
          _
      $region48: #{tpu_custom_call.1} parent=5 // pred_fallthru
        _
      %p299 = scmp.le.s32.totalorder 1, %s16
      %p300 = scmp.lt.s32.totalorder %s16, 3
      %p301 = pnand %p299, %p300
      %p302 = pneg %p301
      // Predicated region
      $region53: #{tpu_custom_call.1} parent=5 // pred_check
        _
      $region54: #{tpu_custom_call.1} parent=5 // pred_check_branch
        %304 = sbr.rel (%p301) target = $region56
      $region55: #{tpu_custom_call.1} parent=5 // pred_region
        %s305 = ssub.s32 %s16, 1
        // Predicated region
        $region57: #{tpu_custom_call.1} parent=55 // pred_check
          %p306 = pneg %p147
        $region58: #{tpu_custom_call.1} parent=55 // pred_check_branch
          %308 = sbr.rel (%p306) target = $region60
        $region59: #{tpu_custom_call.1} parent=55 // pred_region
          %310 = dma.done [#allocation3], 2048
        $region60: #{tpu_custom_call.1} parent=55 // pred_fallthru
          _
        %s311 = smul.u32 4, %s21
        %p312 = scmp.lt.s32.totalorder %s311, 7
        %s313 = scalar_select %p312, %s311, 7
        %s314 = smul.addr %s313, 8
        %s315 = scalar_lea.vmem %s0, %s314
        %p316 = pneg %p42
        %p317 = pneg %p39
        %p318 = pneg %p63
        %p319 = pneg %p60
        %p320 = pneg %p84
        %p321 = pneg %p81
        %p322 = pneg %p105
        %p323 = pneg %p102
        %p324 = pneg %p126
        %p325 = pneg %p123
        %p326 = pneg %p147
        %p327 = pneg %p144
        %p328 = pneg %p168
        %p329 = pneg %p165
        %p330 = pneg %p189
        %p331 = pneg %p186
        %p332 = pneg %p210
        %p333 = pneg %p207
        %p334 = pneg %p236
        %p335 = pneg %p233
        %s336 = smul.u32 4, %s21
        %p337 = scmp.lt.s32.totalorder %s336, 7
        %s338 = scalar_select %p337, %s336, 7
        %s339 = smul.addr %s338, 8
        %s340 = scalar_lea.vmem %s9, %s339
        %s341 = smul.u32 4, %s21
        %p342 = scmp.lt.s32.totalorder %s341, 7
        %s343 = scalar_select %p342, %s341, 7
        %s344 = smul.addr %s343, 8
        %s345 = scalar_lea.vmem %s0, %s344
        %s346 = smul.u32 4, %s21
        %s347 = smul.u32 4, %s21
        %p348 = scmp.lt.s32.totalorder %s347, 7
        %s349 = scalar_select %p348, %s347, 7
        %s350 = smul.addr %s349, 8
        %s351 = scalar_lea.vmem %s9, %s350
        %s352 = smul.u32 4, %s21
        %v353 = vld [vmem:[%s345] sm:$0xff]
        %v354 = vld [vmem:[%s345 + $0x8] sm:$0xff]
        %v355 = vld [vmem:[%s345 + $0x10] sm:$0xff]
        %v356 = vld [vmem:[%s345 + $0x18] sm:$0xff]
        %v357 = vld [vmem:[%s1] sm:$0xff]
        %v358 = vld [vmem:[%s1 + $0x8] sm:$0xff]
        %v359 = vld [vmem:[%s2] sm:$0x1]
        %v361 = vperm.slane %v359, 0
        %vm363 = vcmask 130048
        %v365 = vsel %vm363, %v353, 0
        %v368 = vsel %vm363, %v354, 0
        %v371 = vsel %vm363, %v355, 0
        %v374 = vsel %vm363, %v356, 0
        %376 = vmatpush.msra.mxu0 0.0
        %377 = vmatpush.msra.mxu0 0.0
        %378 = vmatpush.msra.mxu0 0.0
        %379 = vmatpush.msra.mxu0 0.0
        %380 = vmatpush.msra.mxu0 0.0
        %381 = vmatpush.msra.mxu0 0.0
        %382 = vmatpush.msra.mxu0 0.0
        %383 = vmatpush.msra.mxu0 0.0
        %384 = vmatpush.msra.mxu0 0.0
        %385 = vmatpush.msra.mxu0 0.0
        %386 = vmatpush.msra.mxu0 0.0
        %387 = vmatpush.msra.mxu0 0.0
        %388 = vmatpush.msra.mxu0 0.0
        %389 = vmatpush.msra.mxu0 0.0
        %390 = vmatpush.msra.mxu0 %v358
        %391 = vmatpush.msra.mxu0 %v357
        %392 = vmatmul.f32.gmra.mxu0 %v365
        %v393 = vpop.f32.mrf.mxu0
        %v394 = vadd.f32 %v361, %v393
        %395 = vmatmul.f32.gmra.mxu0 %v368
        %v396 = vpop.f32.mrf.mxu0
        %v397 = vadd.f32 %v361, %v396
        %398 = vmatmul.f32.gmra.mxu0 %v371
        %v399 = vpop.f32.mrf.mxu0
        %v400 = vadd.f32 %v361, %v399
        %401 = vmatmul.f32.gmra.mxu0 %v374
        %v402 = vpop.f32.mrf.mxu0
        %v403 = vadd.f32 %v361, %v402
        %404 = vdwg.mxu0
        %v405 = vmax.f32 %v394, 0.0
        %v406 = vmax.f32 %v397, 0.0
        %v407 = vmax.f32 %v400, 0.0
        %v408 = vmax.f32 %v403, 0.0
        %v409 = vld [vmem:[%s3] sm:$0xff]
        %v410 = vld [vmem:[%s3 + $0x8] sm:$0xff]
        %v411 = vld [vmem:[%s3 + $0x10] sm:$0xff]
        %v412 = vld [vmem:[%s3 + $0x18] sm:$0xff]
        %v413 = vld [vmem:[%s3 + $0x20] sm:$0xff]
        %v414 = vld [vmem:[%s3 + $0x28] sm:$0xff]
        %v415 = vld [vmem:[%s3 + $0x30] sm:$0xff]
        %v416 = vld [vmem:[%s3 + $0x38] sm:$0xff]
        %v417 = vld [vmem:[%s3 + $0x40] sm:$0xff]
        %v418 = vld [vmem:[%s3 + $0x48] sm:$0xff]
        %v419 = vld [vmem:[%s3 + $0x50] sm:$0xff]
        %v420 = vld [vmem:[%s3 + $0x58] sm:$0xff]
        %v421 = vld [vmem:[%s3 + $0x60] sm:$0xff]
        %v422 = vld [vmem:[%s3 + $0x68] sm:$0xff]
        %v423 = vld [vmem:[%s3 + $0x70] sm:$0xff]
        %v424 = vld [vmem:[%s3 + $0x78] sm:$0xff]
        %v425 = vld [vmem:[%s4] sm:$0x1]
        %v427 = vperm.slane %v425, 0
        %429 = vmatpush.msra.mxu0 %v424
        %430 = vmatpush.msra.mxu0 %v423
        %431 = vmatpush.msra.mxu0 %v422
        %432 = vmatpush.msra.mxu0 %v421
        %433 = vmatpush.msra.mxu0 %v420
        %434 = vmatpush.msra.mxu0 %v419
        %435 = vmatpush.msra.mxu0 %v418
        %436 = vmatpush.msra.mxu0 %v417
        %437 = vmatpush.msra.mxu0 %v416
        %438 = vmatpush.msra.mxu0 %v415
        %439 = vmatpush.msra.mxu0 %v414
        %440 = vmatpush.msra.mxu0 %v413
        %441 = vmatpush.msra.mxu0 %v412
        %442 = vmatpush.msra.mxu0 %v411
        %443 = vmatpush.msra.mxu0 %v410
        %444 = vmatpush.msra.mxu0 %v409
        %445 = vmatmul.f32.gmra.mxu0 %v405
        %v446 = vpop.f32.mrf.mxu0
        %v447 = vadd.f32 %v427, %v446
        %448 = vmatmul.f32.gmra.mxu0 %v406
        %v449 = vpop.f32.mrf.mxu0
        %v450 = vadd.f32 %v427, %v449
        %451 = vmatmul.f32.gmra.mxu0 %v407
        %v452 = vpop.f32.mrf.mxu0
        %v453 = vadd.f32 %v427, %v452
        %454 = vmatmul.f32.gmra.mxu0 %v408
        %v455 = vpop.f32.mrf.mxu0
        %v456 = vadd.f32 %v427, %v455
        %457 = vdwg.mxu0
        %v458 = vmax.f32 %v447, 0.0
        %v459 = vmax.f32 %v450, 0.0
        %v460 = vmax.f32 %v453, 0.0
        %v461 = vmax.f32 %v456, 0.0
        %v462 = vld [vmem:[#allocation2] sm:$0xff]
        %v463 = vld [vmem:[#allocation2 + $0x8] sm:$0xff]
        %v464 = vld [vmem:[#allocation2 + $0x10] sm:$0xff]
        %v465 = vld [vmem:[#allocation2 + $0x18] sm:$0xff]
        %v466 = vld [vmem:[#allocation2 + $0x20] sm:$0xff]
        %v467 = vld [vmem:[#allocation2 + $0x28] sm:$0xff]
        %v468 = vld [vmem:[#allocation2 + $0x30] sm:$0xff]
        %v469 = vld [vmem:[#allocation2 + $0x38] sm:$0xff]
        %v470 = vld [vmem:[#allocation2 + $0x40] sm:$0xff]
        %v471 = vld [vmem:[#allocation2 + $0x48] sm:$0xff]
        %v472 = vld [vmem:[#allocation2 + $0x50] sm:$0xff]
        %v473 = vld [vmem:[#allocation2 + $0x58] sm:$0xff]
        %v474 = vld [vmem:[#allocation2 + $0x60] sm:$0xff]
        %v475 = vld [vmem:[#allocation2 + $0x68] sm:$0xff]
        %v476 = vld [vmem:[#allocation2 + $0x70] sm:$0xff]
        %v477 = vld [vmem:[#allocation2 + $0x78] sm:$0xff]
        %v478 = vld [vmem:[%s6] sm:$0x1]
        %v480 = vperm.slane %v478, 0
        %482 = vmatpush.msra.mxu0 %v477
        %483 = vmatpush.msra.mxu0 %v476
        %484 = vmatpush.msra.mxu0 %v475
        %485 = vmatpush.msra.mxu0 %v474
        %486 = vmatpush.msra.mxu0 %v473
        %487 = vmatpush.msra.mxu0 %v472
        %488 = vmatpush.msra.mxu0 %v471
        %489 = vmatpush.msra.mxu0 %v470
        %490 = vmatpush.msra.mxu0 %v469
        %491 = vmatpush.msra.mxu0 %v468
        %492 = vmatpush.msra.mxu0 %v467
        %493 = vmatpush.msra.mxu0 %v466
        %494 = vmatpush.msra.mxu0 %v465
        %495 = vmatpush.msra.mxu0 %v464
        %496 = vmatpush.msra.mxu0 %v463
        %497 = vmatpush.msra.mxu0 %v462
        %498 = vmatmul.f32.gmra.mxu0 %v458
        %v499 = vpop.f32.mrf.mxu0
        %v500 = vadd.f32 %v480, %v499
        %501 = vmatmul.f32.gmra.mxu0 %v459
        %v502 = vpop.f32.mrf.mxu0
        %v503 = vadd.f32 %v480, %v502
        %504 = vmatmul.f32.gmra.mxu0 %v460
        %v505 = vpop.f32.mrf.mxu0
        %v506 = vadd.f32 %v480, %v505
        %507 = vmatmul.f32.gmra.mxu0 %v461
        %v508 = vpop.f32.mrf.mxu0
        %v509 = vadd.f32 %v480, %v508
        %510 = vdwg.mxu0
        %v511 = vmax.f32 %v500, 0.0
        %v512 = vmax.f32 %v503, 0.0
        %v513 = vmax.f32 %v506, 0.0
        %v514 = vmax.f32 %v509, 0.0
        %v515 = vld [vmem:[%s7] sm:$0xff]
        %v516 = vld [vmem:[%s7 + $0x8] sm:$0xff]
        %v517 = vld [vmem:[%s7 + $0x10] sm:$0xff]
        %v518 = vld [vmem:[%s7 + $0x18] sm:$0xff]
        %v519 = vld [vmem:[%s7 + $0x20] sm:$0xff]
        %v520 = vld [vmem:[%s7 + $0x28] sm:$0xff]
        %v521 = vld [vmem:[%s7 + $0x30] sm:$0xff]
        %v522 = vld [vmem:[%s7 + $0x38] sm:$0xff]
        %v523 = vld [vmem:[%s7 + $0x40] sm:$0xff]
        %v524 = vld [vmem:[%s7 + $0x48] sm:$0xff]
        %v525 = vld [vmem:[%s7 + $0x50] sm:$0xff]
        %v526 = vld [vmem:[%s7 + $0x58] sm:$0xff]
        %v527 = vld [vmem:[%s7 + $0x60] sm:$0xff]
        %v528 = vld [vmem:[%s7 + $0x68] sm:$0xff]
        %v529 = vld [vmem:[%s7 + $0x70] sm:$0xff]
        %v530 = vld [vmem:[%s7 + $0x78] sm:$0xff]
        %v531 = vld [vmem:[%s8] sm:$0x1]
        %v533 = vperm.slane %v531, 0
        %535 = vmatpush.msra.mxu0 %v530
        %536 = vmatpush.msra.mxu0 %v529
        %537 = vmatpush.msra.mxu0 %v528
        %538 = vmatpush.msra.mxu0 %v527
        %539 = vmatpush.msra.mxu0 %v526
        %540 = vmatpush.msra.mxu0 %v525
        %541 = vmatpush.msra.mxu0 %v524
        %542 = vmatpush.msra.mxu0 %v523
        %543 = vmatpush.msra.mxu0 %v522
        %544 = vmatpush.msra.mxu0 %v521
        %545 = vmatpush.msra.mxu0 %v520
        %546 = vmatpush.msra.mxu0 %v519
        %547 = vmatpush.msra.mxu0 %v518
        %548 = vmatpush.msra.mxu0 %v517
        %549 = vmatpush.msra.mxu0 %v516
        %550 = vmatpush.msra.mxu0 %v515
        %551 = vmatmul.f32.gmra.mxu0 %v511
        %v552 = vpop.f32.mrf.mxu0
        %v553 = vadd.f32 %v533, %v552
        %554 = vmatmul.f32.gmra.mxu0 %v512
        %v555 = vpop.f32.mrf.mxu0
        %v556 = vadd.f32 %v533, %v555
        %557 = vmatmul.f32.gmra.mxu0 %v513
        %v558 = vpop.f32.mrf.mxu0
        %v559 = vadd.f32 %v533, %v558
        %560 = vmatmul.f32.gmra.mxu0 %v514
        %v561 = vpop.f32.mrf.mxu0
        %v562 = vadd.f32 %v533, %v561
        %563 = vdwg.mxu0
        %vm564 = vcmask 31744
        %565 = vst.msk [vmem:[%s351] sm:$0xff] %vm564, %v553
        %566 = vst.msk [vmem:[%s351 + $0x8] sm:$0xff] %vm564, %v556
        %567 = vst.msk [vmem:[%s351 + $0x10] sm:$0xff] %vm564, %v559
        %568 = vst.msk [vmem:[%s351 + $0x18] sm:$0xff] %vm564, %v562
        %s569 = smul.u32 4, %s21
        %p570 = scmp.lt.s32.totalorder %s569, 7
        %s571 = scalar_select %p570, %s569, 7
        %s572 = smul.addr %s571, 8
        %s573 = scalar_lea.vmem %s9, %s572
        // Predicated region
        $region61: #{tpu_custom_call.1} parent=55 // pred_check
          %p574 = pneg %p233
        $region62: #{tpu_custom_call.1} parent=55 // pred_check_branch
          %576 = sbr.rel (%p574) target = $region64
        $region63: #{tpu_custom_call.1} parent=55 // pred_region
          %s577 = smul.u32 4, %s21
        $region64: #{tpu_custom_call.1} parent=55 // pred_fallthru
          _
      $region56: #{tpu_custom_call.1} parent=5 // pred_fallthru
        _
      %p578 = scmp.le.s32.totalorder 2, %s16
      // Predicated region
      $region65: #{tpu_custom_call.1} parent=5 // pred_check
        %p579 = pneg %p578
      $region66: #{tpu_custom_call.1} parent=5 // pred_check_branch
        %581 = sbr.rel (%p579) target = $region68
      $region67: #{tpu_custom_call.1} parent=5 // pred_region
        %s582 = ssub.s32 %s16, 2
        // Predicated region
        $region69: #{tpu_custom_call.1} parent=67 // pred_check
          %p583 = pneg %p239
        $region70: #{tpu_custom_call.1} parent=67 // pred_check_branch
          %585 = sbr.rel (%p583) target = $region72
        $region71: #{tpu_custom_call.1} parent=67 // pred_region
          %s586 = smul.u32 4, %s22
          %p587 = scmp.lt.s32.totalorder %s586, 7
          %s588 = scalar_select %p587, %s586, 7
          %s589 = smul.addr %s588, 8
          %s590 = scalar_lea.vmem %s9, %s589
        $region72: #{tpu_custom_call.1} parent=67 // pred_fallthru
          _
      $region68: #{tpu_custom_call.1} parent=5 // pred_fallthru
        _
    $region6: #{tpu_custom_call.1} parent=1 // loop_footer
      %s20 = sadd.s32 1, %s16
    $region7: #{tpu_custom_call.1} parent=1 // loop_footer_branch
      %15 = sbr.rel target = $region3
    $region8: #{tpu_custom_call.1} parent=1 // loop_exit
      _
    %591 = vsyncpa [#allocation3], 1
    %s592 = scalar_lea.sflag [#allocation3], 1
    %593 = vsyncpa %s592, 1

</llo_original>
